<compile_context>
chip_gen: v5e
topology: v5e:2x2
jax: 0.10.0
libtpu: 0.0.40
codegen_flags: <defaults>
</compile_context>

<pallas_src>
import functools
import math

import jax
import jax.numpy as jnp
from jax.experimental import pallas as pl
from jax.experimental.pallas import tpu as pltpu


def _round_up(x, m):
    return (x + m - 1) // m * m


def _dice_focal_kernel(x_ref, t_ref, inter_out, union_out, foc_out,
                       *, gamma, eps, G, Np, N, tile_n, needs_mask,
                       pad_start_tile):
    k = pl.program_id(0)

    @pl.when(k == 0)
    def _init():
        inter_out[...] = jnp.zeros_like(inter_out)
        union_out[...] = jnp.zeros_like(union_out)
        foc_out[...] = jnp.zeros_like(foc_out)

    x = x_ref[...].astype(jnp.float32)      # (rows, tile_n)
    t = t_ref[...].astype(jnp.float32)

    # ---- Dice partial sums (unclamped input, as in the PyTorch module) ----
    # Zero padding contributes exactly zero here, so no mask is needed.
    inter_out[...] += jnp.sum(x * t, axis=-1, keepdims=True)
    union_out[...] += jnp.sum(x * x + t * t, axis=-1, keepdims=True)

    # ---- Focal element-wise terms (clamped input) ----
    xc = jnp.clip(x, eps, 1.0 - eps)
    log_x = jnp.log(xc)
    log_1mx = jnp.log1p(-xc)
    if gamma == 2.0:
        one_m = 1.0 - xc
        pow_1mx = one_m * one_m                  # VPU multiplies, no jnp.power
        pow_x = xc * xc
    else:
        # General gamma: reuse the two logs; 2 exp instead of 2 pow(=exp+log).
        pow_1mx = jnp.exp(gamma * log_1mx)
        pow_x = jnp.exp(gamma * log_x)
    focal_el = -(t * pow_1mx * log_x + (1.0 - t) * pow_x * log_1mx)

    def _acc_focal(mask_pad):
        el = focal_el
        if mask_pad:
            # Zero the contribution of the zero-padded tail of each batch row.
            r_idx = jax.lax.broadcasted_iota(jnp.int32, focal_el.shape, 0)
            c_idx = jax.lax.broadcasted_iota(jnp.int32, focal_el.shape, 1)
            feat = (r_idx & (G - 1)) * Np + k * tile_n + c_idx
            el = jnp.where(feat < N, el, 0.0)
        foc_out[...] += jnp.sum(el, axis=-1, keepdims=True)

    if not needs_mask:
        _acc_focal(False)                 # no padding anywhere
    elif pad_start_tile <= 0:
        _acc_focal(True)                  # every tile can touch padding
    else:
        @pl.when(k < pad_start_tile)      # interior tiles: no mask cost
        def _interior():
            _acc_focal(False)

        @pl.when(k >= pad_start_tile)     # only edge tiles pay for the mask
        def _edge():
            _acc_focal(True)


def dice_and_focal_loss(input_nd, target_nd, *, gamma=2.0,
                        block_bytes=2 << 20):
    """Equivalent of Dice_and_FocalLoss(gamma).forward(input, target)."""
    smooth = 1.0
    eps = 1e-3
    B = int(input_nd.shape[0])
    N = int(math.prod(input_nd.shape[1:]))

    x = input_nd.reshape(B, N)
    if not jnp.issubdtype(x.dtype, jnp.floating):
        x = x.astype(jnp.float32)

    # Keep the target in a narrow dtype (no f32 upcast of the DMA).  bf16 is
    # exact for {0,1} segmentation masks; float targets keep their own dtype.
    t = target_nd.reshape(B, N)
    if not jnp.issubdtype(t.dtype, jnp.floating):
        t = t.astype(jnp.bfloat16 if t.dtype == jnp.bool_ else jnp.float32)

    itemsize_x = jnp.dtype(x.dtype).itemsize
    itemsize_t = jnp.dtype(t.dtype).itemsize
    sub = max(8, 32 // min(itemsize_x, itemsize_t))  # sublane pack multiple
    G = sub // math.gcd(B, sub)            # sub-rows per batch row (power of 2)
    rows = B * G                           # multiple of `sub`

    # --- tiling: choose the number of steps first, then a minimal tile ---
    npg = -(-N // G)                       # features per sub-row (ceil)
    itemsize = max(itemsize_x, itemsize_t)
    tn_cap = max(128, ((block_bytes // itemsize) // rows) // 128 * 128)
    steps = max(1, -(-npg // tn_cap))      # grid length
    tn = _round_up(-(-npg // steps), 128)  # lane tile (<= tn_cap, mult of 128)
    Np = steps * tn                        # padded per-sub-row length
    assert G * Np < 2 ** 31, "feature index would overflow int32"

    needs_mask = (G * Np != N)
    if needs_mask:
        pad = G * Np - N
        x = jnp.pad(x, ((0, 0), (0, pad)))   # zeros: dice terms vanish exactly
        t = jnp.pad(t, ((0, 0), (0, pad)))
        # First column (of any sub-row) that can be padding -> first tile that
        # needs the focal mask.  Earlier tiles skip the mask entirely.
        first_pad_col = max(0, N - (G - 1) * Np)
        pad_start_tile = first_pad_col // tn
    else:
        pad_start_tile = steps               # unused
    x = x.reshape(rows, Np)
    t = t.reshape(rows, Np)

    kernel = functools.partial(
        _dice_focal_kernel,
        gamma=float(gamma), eps=eps, G=G, Np=Np, N=N, tile_n=tn,
        needs_mask=needs_mask, pad_start_tile=pad_start_tile)

    out_shape_row = jax.ShapeDtypeStruct((rows, 1), jnp.float32)
    out_spec = pl.BlockSpec((rows, 1), lambda k: (0, 0))
    in_spec = pl.BlockSpec((rows, tn), lambda k: (0, k))

    inter_p, union_p, foc_p = pl.pallas_call(
        kernel,
        out_shape=(out_shape_row, out_shape_row, out_shape_row),
        grid_spec=pltpu.PrefetchScalarGridSpec(
            num_scalar_prefetch=0,
            grid=(steps,),
            in_specs=[in_spec, in_spec],
            out_specs=[out_spec, out_spec, out_spec]),
        compiler_params=pltpu.CompilerParams(
            dimension_semantics=("arbitrary",),
            vmem_limit_bytes=48 * 1024 * 1024),
    )(x, t)

    # Tiny final combine in plain JAX (per-batch grouping + means).
    inter = inter_p.reshape(B, G).sum(axis=1)
    union = union_p.reshape(B, G).sum(axis=1)
    dice = jnp.mean(1.0 - (2.0 * inter + smooth) / (union + smooth))
    focal = jnp.sum(foc_p) / float(B * N)
    return dice + focal


def _reference(input_nd, target_nd, gamma=2.0):
    """Pure-JAX port of the PyTorch module, for verification."""
    x = input_nd.astype(jnp.float32)
    t = target_nd.astype(jnp.float32)
    axes = tuple(range(1, x.ndim))
    intersect = jnp.sum(x * t, axis=axes)
    union = jnp.sum(x ** 2, axis=axes) + jnp.sum(t ** 2, axis=axes)
    dice = jnp.mean(1.0 - (2.0 * intersect + 1.0) / (union + 1.0))
    eps = 1e-3
    xc = jnp.clip(x, eps, 1.0 - eps)
    focal = jnp.mean(-(t * (1.0 - xc) ** gamma * jnp.log(xc)
                       + (1.0 - t) * xc ** gamma * jnp.log(1.0 - xc)))
    return dice + focal


if __name__ == "__main__":
    key = jax.random.PRNGKey(0)
    k1, k2, k3, k4, k5, k6, k7, k8 = jax.random.split(key, 8)

    # Test 1: tile-aligned shape (no padding / no mask path), f32.
    B, C, H, W = 2, 4, 16, 16
    inp = jax.nn.sigmoid(jax.random.normal(k1, (B, C, H, W), jnp.float32))
    tgt = (jax.random.uniform(k2, (B, C, H, W)) > 0.5).astype(jnp.float32)
    loss = jax.block_until_ready(dice_and_focal_loss(inp, tgt, gamma=2.0))
    ref = _reference(inp, tgt, gamma=2.0)
    assert jnp.allclose(loss, ref, rtol=1e-5, atol=1e-5), (loss, ref)

    # Test 2: non-aligned feature count -> minimal pad + in-kernel mask.
    B2, C2, H2, W2 = 2, 3, 10, 10
    inp2 = jax.nn.sigmoid(jax.random.normal(k3, (B2, C2, H2, W2), jnp.float32))
    tgt2 = (jax.random.uniform(k4, (B2, C2, H2, W2)) > 0.5).astype(jnp.float32)
    loss2 = jax.block_until_ready(dice_and_focal_loss(inp2, tgt2, gamma=2.0))
    ref2 = _reference(inp2, tgt2, gamma=2.0)
    assert jnp.allclose(loss2, ref2, rtol=1e-5, atol=1e-5), (loss2, ref2)

    # Test 3: bf16 predictions + bool target (narrow-target HBM path).
    B3, C3, H3, W3 = 2, 4, 12, 12
    inp3 = jax.nn.sigmoid(
        jax.random.normal(k5, (B3, C3, H3, W3))).astype(jnp.bfloat16)
    tgt3 = jax.random.uniform(k6, (B3, C3, H3, W3)) > 0.5        # bool mask
    loss3 = jax.block_until_ready(dice_and_focal_loss(inp3, tgt3, gamma=2.0))
    ref3 = _reference(inp3, tgt3, gamma=2.0)
    assert jnp.allclose(loss3, ref3, rtol=1e-4, atol=1e-4), (loss3, ref3)

    # Test 4: multi-tile grid with padding confined to the last tile
    # (exercises the @pl.when interior/edge mask gating).  Small block budget
    # forces tn=128 and steps>1 at this toy size.
    B4, C4, H4, W4 = 2, 10, 10, 10
    inp4 = jax.nn.sigmoid(jax.random.normal(k7, (B4, C4, H4, W4), jnp.float32))
    tgt4 = (jax.random.uniform(k8, (B4, C4, H4, W4)) > 0.5).astype(jnp.float32)
    loss4 = jax.block_until_ready(
        dice_and_focal_loss(inp4, tgt4, gamma=2.0, block_bytes=4096))
    ref4 = _reference(inp4, tgt4, gamma=2.0)
    assert jnp.allclose(loss4, ref4, rtol=1e-5, atol=1e-5), (loss4, ref4)

    print("KERNEL_OK")
</pallas_src>

<mosaic_0001>
module attributes {stable_mosaic.version = 11 : i64} {
  func.func @_dice_focal_kernel(%arg0: i32, %arg1: memref<8x256xf32, #tpu.memory_space<vmem>>, %arg2: memref<8x256xf32, #tpu.memory_space<vmem>>, %arg3: memref<8x1xf32, #tpu.memory_space<vmem>>, %arg4: memref<8x1xf32, #tpu.memory_space<vmem>>, %arg5: memref<8x1xf32, #tpu.memory_space<vmem>>) attributes {dimension_semantics = [#tpu.dimension_semantics<arbitrary>], iteration_bounds = array<i64: 1>, scalar_prefetch = 0 : i64, scratch_operands = 0 : i64, tpu.core_type = #tpu.core_type<tc>, window_params = [{transform_indices = @transform_0, window_bounds = array<i64: 8, 256>}, {transform_indices = @transform_1, window_bounds = array<i64: 8, 256>}, {pipeline_mode = #tpu.pipeline_mode<synchronous>, transform_indices = @transform_2, window_bounds = array<i64: 8, 1>}, {pipeline_mode = #tpu.pipeline_mode<synchronous>, transform_indices = @transform_3, window_bounds = array<i64: 8, 1>}, {pipeline_mode = #tpu.pipeline_mode<synchronous>, transform_indices = @transform_4, window_bounds = array<i64: 8, 1>}]} {
    %c0_i32 = arith.constant 0 : i32
    %0 = arith.cmpi eq, %arg0, %c0_i32 : i32
    %1 = arith.extui %0 : i1 to i32
    %c0_i32_0 = arith.constant 0 : i32
    %2 = arith.cmpi ne, %1, %c0_i32_0 : i32
    scf.if %2 {
      %cst_24 = arith.constant 0.000000e+00 : f32
      %45 = vector.broadcast %cst_24 : f32 to vector<8x1xf32>
      %c0_25 = arith.constant 0 : index
      %c0_26 = arith.constant 0 : index
      %46 = vector.load %arg3[%c0_25, %c0_26] : memref<8x1xf32, #tpu.memory_space<vmem>>, vector<8x1xf32>
      tpu.vector_store %arg3[%c0_25, %c0_26], %45 {strides = array<i32>} : memref<8x1xf32, #tpu.memory_space<vmem>>, vector<8x1xf32>,
      %cst_27 = arith.constant 0.000000e+00 : f32
      %47 = vector.broadcast %cst_27 : f32 to vector<8x1xf32>
      %c0_28 = arith.constant 0 : index
      %c0_29 = arith.constant 0 : index
      %48 = vector.load %arg4[%c0_28, %c0_29] : memref<8x1xf32, #tpu.memory_space<vmem>>, vector<8x1xf32>
      tpu.vector_store %arg4[%c0_28, %c0_29], %47 {strides = array<i32>} : memref<8x1xf32, #tpu.memory_space<vmem>>, vector<8x1xf32>,
      %cst_30 = arith.constant 0.000000e+00 : f32
      %49 = vector.broadcast %cst_30 : f32 to vector<8x1xf32>
      %c0_31 = arith.constant 0 : index
      %c0_32 = arith.constant 0 : index
      %50 = vector.load %arg5[%c0_31, %c0_32] : memref<8x1xf32, #tpu.memory_space<vmem>>, vector<8x1xf32>
      tpu.vector_store %arg5[%c0_31, %c0_32], %49 {strides = array<i32>} : memref<8x1xf32, #tpu.memory_space<vmem>>, vector<8x1xf32>,
    } else {
    }
    %c0 = arith.constant 0 : index
    %c0_1 = arith.constant 0 : index
    %3 = vector.load %arg1[%c0, %c0_1] : memref<8x256xf32, #tpu.memory_space<vmem>>, vector<8x256xf32>
    %c0_2 = arith.constant 0 : index
    %c0_3 = arith.constant 0 : index
    %4 = vector.load %arg2[%c0_2, %c0_3] : memref<8x256xf32, #tpu.memory_space<vmem>>, vector<8x256xf32>
    %c0_4 = arith.constant 0 : index
    %c0_5 = arith.constant 0 : index
    %5 = vector.load %arg3[%c0_4, %c0_5] : memref<8x1xf32, #tpu.memory_space<vmem>>, vector<8x1xf32>
    %6 = arith.mulf %3, %4 : vector<8x256xf32>
    %cst = arith.constant dense<0.000000e+00> : vector<8xf32>
    %7 = vector.multi_reduction <add>, %6, %cst [1] : vector<8x256xf32> to vector<8xf32>
    %8 = vector.shape_cast %7 : vector<8xf32> to vector<8x1xf32>
    %9 = arith.addf %5, %8 : vector<8x1xf32>
    %c0_6 = arith.constant 0 : index
    %c0_7 = arith.constant 0 : index
    %10 = vector.load %arg3[%c0_6, %c0_7] : memref<8x1xf32, #tpu.memory_space<vmem>>, vector<8x1xf32>
    tpu.vector_store %arg3[%c0_6, %c0_7], %9 {strides = array<i32>} : memref<8x1xf32, #tpu.memory_space<vmem>>, vector<8x1xf32>,
    %c0_8 = arith.constant 0 : index
    %c0_9 = arith.constant 0 : index
    %11 = vector.load %arg4[%c0_8, %c0_9] : memref<8x1xf32, #tpu.memory_space<vmem>>, vector<8x1xf32>
    %12 = arith.mulf %3, %3 : vector<8x256xf32>
    %13 = arith.mulf %4, %4 : vector<8x256xf32>
    %14 = arith.addf %12, %13 : vector<8x256xf32>
    %cst_10 = arith.constant dense<0.000000e+00> : vector<8xf32>
    %15 = vector.multi_reduction <add>, %14, %cst_10 [1] : vector<8x256xf32> to vector<8xf32>
    %16 = vector.shape_cast %15 : vector<8xf32> to vector<8x1xf32>
    %17 = arith.addf %11, %16 : vector<8x1xf32>
    %c0_11 = arith.constant 0 : index
    %c0_12 = arith.constant 0 : index
    %18 = vector.load %arg4[%c0_11, %c0_12] : memref<8x1xf32, #tpu.memory_space<vmem>>, vector<8x1xf32>
    tpu.vector_store %arg4[%c0_11, %c0_12], %17 {strides = array<i32>} : memref<8x1xf32, #tpu.memory_space<vmem>>, vector<8x1xf32>,
    %cst_13 = arith.constant 1.000000e-03 : f32
    %cst_14 = arith.constant 9.990000e-01 : f32
    %19 = vector.broadcast %cst_13 : f32 to vector<8x256xf32>
    %20 = arith.maximumf %19, %3 : vector<8x256xf32>
    %21 = vector.broadcast %cst_14 : f32 to vector<8x256xf32>
    %22 = arith.minimumf %21, %20 : vector<8x256xf32>
    %23 = math.log %22 : vector<8x256xf32>
    %cst_15 = arith.constant 0.000000e+00 : f32
    %24 = vector.broadcast %cst_15 : f32 to vector<8x256xf32>
    %25 = arith.subf %24, %22 : vector<8x256xf32>
    %26 = math.log1p %25 : vector<8x256xf32>
    %cst_16 = arith.constant 1.000000e+00 : f32
    %27 = vector.broadcast %cst_16 : f32 to vector<8x256xf32>
    %28 = arith.subf %27, %22 : vector<8x256xf32>
    %29 = arith.mulf %28, %28 : vector<8x256xf32>
    %30 = arith.mulf %22, %22 : vector<8x256xf32>
    %31 = arith.mulf %4, %29 : vector<8x256xf32>
    %32 = arith.mulf %31, %23 : vector<8x256xf32>
    %cst_17 = arith.constant 1.000000e+00 : f32
    %33 = vector.broadcast %cst_17 : f32 to vector<8x256xf32>
    %34 = arith.subf %33, %4 : vector<8x256xf32>
    %35 = arith.mulf %34, %30 : vector<8x256xf32>
    %36 = arith.mulf %35, %26 : vector<8x256xf32>
    %37 = arith.addf %32, %36 : vector<8x256xf32>
    %cst_18 = arith.constant 0.000000e+00 : f32
    %38 = vector.broadcast %cst_18 : f32 to vector<8x256xf32>
    %39 = arith.subf %38, %37 : vector<8x256xf32>
    %c0_19 = arith.constant 0 : index
    %c0_20 = arith.constant 0 : index
    %40 = vector.load %arg5[%c0_19, %c0_20] : memref<8x1xf32, #tpu.memory_space<vmem>>, vector<8x1xf32>
    %cst_21 = arith.constant dense<0.000000e+00> : vector<8xf32>
    %41 = vector.multi_reduction <add>, %39, %cst_21 [1] : vector<8x256xf32> to vector<8xf32>
    %42 = vector.shape_cast %41 : vector<8xf32> to vector<8x1xf32>
    %43 = arith.addf %40, %42 : vector<8x1xf32>
    %c0_22 = arith.constant 0 : index
    %c0_23 = arith.constant 0 : index
    %44 = vector.load %arg5[%c0_22, %c0_23] : memref<8x1xf32, #tpu.memory_space<vmem>>, vector<8x1xf32>
    tpu.vector_store %arg5[%c0_22, %c0_23], %43 {strides = array<i32>} : memref<8x1xf32, #tpu.memory_space<vmem>>, vector<8x1xf32>,
    return
  }
  func.func @transform_0(%arg0: i32) -> (i32, i32) {
    %c0_i32 = arith.constant 0 : i32
    %c0_i32_0 = arith.constant 0 : i32
    return %c0_i32, %arg0 : i32, i32
  }
  func.func @transform_1(%arg0: i32) -> (i32, i32) {
    %c0_i32 = arith.constant 0 : i32
    %c0_i32_0 = arith.constant 0 : i32
    return %c0_i32, %arg0 : i32, i32
  }
  func.func @transform_2(%arg0: i32) -> (i32, i32) {
    %c0_i32 = arith.constant 0 : i32
    %c0_i32_0 = arith.constant 0 : i32
    %c0_i32_1 = arith.constant 0 : i32
    return %c0_i32, %c0_i32_0 : i32, i32
  }
  func.func @transform_3(%arg0: i32) -> (i32, i32) {
    %c0_i32 = arith.constant 0 : i32
    %c0_i32_0 = arith.constant 0 : i32
    %c0_i32_1 = arith.constant 0 : i32
    return %c0_i32, %c0_i32_0 : i32, i32
  }
  func.func @transform_4(%arg0: i32) -> (i32, i32) {
    %c0_i32 = arith.constant 0 : i32
    %c0_i32_0 = arith.constant 0 : i32
    %c0_i32_1 = arith.constant 0 : i32
    return %c0_i32, %c0_i32_0 : i32, i32
  }
}

</mosaic_0001>

<llo_original>
// kernel: tpu_custom_call.1
$region0: #{tpu_custom_call.1}
  #allocation0 [shape = 'u32[]', space=smem, size = 0x4, offset = 0x4, fixed_abs, tag = 'smem constant byte address 0x4 - core index']
  #allocation1 [shape = 'u32[72,128]{1,0:T(1,128)}', space=vmem, size = 0x9000, scoped, tag = 'internal scratch']
  %s0 = inlined_call_operand.hbm [shape: f32[8,256], index: 0, kind: input, shape index: {}]
  %s1 = inlined_call_operand.hbm [shape: f32[8,256], index: 1, kind: input, shape index: {}]
  %s2 = inlined_call_operand.vmem [shape: f32[8,1], index: 2, kind: output, shape index: {0}]
  %s3 = inlined_call_operand.vmem [shape: f32[8,1], index: 3, kind: output, shape index: {1}]
  %s4 = inlined_call_operand.vmem [shape: f32[8,1], index: 4, kind: output, shape index: {2}]
  %5 = xla_tuple %s2, %s3, %s4
  %s6 = sld [smem:[#allocation0]]
  $region46: #{tpu_custom_call.1} parent=0
    _
  %s8 = ssub.s32 1, %s6
  %s9 = scalar_select 0, %s8, %s6
  $region1: #{tpu_custom_call.1} parent=0
    #allocation2 [shape = 'u8[8192]{0}', space=vmem, size = 0x2000, scoped, tag = 'input window, operand 0, single buffered']
    #allocation3 [shape = 's32[1]{0}', space=sflag, size = 0x4, scoped, tag = 'scoped memory for tpu_custom_call.1']
    #allocation4 [shape = 'u8[8192]{0}', space=vmem, size = 0x2000, scoped, tag = 'input window, operand 1, single buffered']
    #allocation5 [shape = 's32[1]{0}', space=sflag, size = 0x4, scoped, tag = 'scoped memory for tpu_custom_call.1']
    %10 = vsyncpa [#allocation3], 0
    %11 = vsyncpa [#allocation5], 0
    // Predicated region
    $region2: #{tpu_custom_call.1} parent=1 // pred_check
      _
    $region3: #{tpu_custom_call.1} parent=1 // pred_check_branch
      %13 = sbr.rel (0) target = $region5
    $region4: #{tpu_custom_call.1} parent=1 // pred_region
      %15 = vsyncadd [#allocation3], 0
      %s17 = sshll.u32 %s0, 4
      %s18 = int_to_ptr.hbm [resolvable:$true] %s17
      %s19 = sshll.u32 [#allocation2], 4
      %s20 = int_to_ptr.vmem [resolvable:$true] %s19
      %22 = dma.hbm_to_vmem [thread:$0]  %s18, 256, %s20, [#allocation3]
    $region5: #{tpu_custom_call.1} parent=1 // pred_fallthru
      _
    // Predicated region
    $region6: #{tpu_custom_call.1} parent=1 // pred_check
      _
    $region7: #{tpu_custom_call.1} parent=1 // pred_check_branch
      %24 = sbr.rel (0) target = $region9
    $region8: #{tpu_custom_call.1} parent=1 // pred_region
      %26 = vsyncadd [#allocation5], 0
      %s28 = sshll.u32 %s1, 4
      %s29 = int_to_ptr.hbm [resolvable:$true] %s28
      %s30 = sshll.u32 [#allocation4], 4
      %s31 = int_to_ptr.vmem [resolvable:$true] %s30
      %33 = dma.hbm_to_vmem [thread:$0]  %s29, 256, %s31, [#allocation5]
    $region9: #{tpu_custom_call.1} parent=1 // pred_fallthru
      _
    // Predicated region
    $region10: #{tpu_custom_call.1} parent=1 // pred_check
      _
    $region11: #{tpu_custom_call.1} parent=1 // pred_check_branch
      %35 = sbr.rel (0) target = $region13
    $region12: #{tpu_custom_call.1} parent=1 // pred_region
      %37 = dma.done [#allocation3], 256
    $region13: #{tpu_custom_call.1} parent=1 // pred_fallthru
      _
    // Predicated region
    $region14: #{tpu_custom_call.1} parent=1 // pred_check
      _
    $region15: #{tpu_custom_call.1} parent=1 // pred_check_branch
      %39 = sbr.rel (0) target = $region17
    $region16: #{tpu_custom_call.1} parent=1 // pred_region
      %41 = dma.done [#allocation5], 256
    $region17: #{tpu_custom_call.1} parent=1 // pred_fallthru
      _
    %p42 = scmp.eq.s32.totalorder 0, 0
    // Predicated region
    $region18: #{tpu_custom_call.1} parent=1 // pred_check
      %p43 = pneg %p42
    $region19: #{tpu_custom_call.1} parent=1 // pred_check_branch
      %45 = sbr.rel (%p43) target = $region21
    $region20: #{tpu_custom_call.1} parent=1 // pred_region
      %vm46 = vcmask 7168
      %47 = vst.msk [vmem:[%s2] sm:$0xff] %vm46, 0.0
      %48 = vst.msk [vmem:[%s3] sm:$0xff] %vm46, 0.0
      %49 = vst.msk [vmem:[%s4] sm:$0xff] %vm46, 0.0
    $region21: #{tpu_custom_call.1} parent=1 // pred_fallthru
      _
    %v50 = vld [vmem:[#allocation2] sm:$0xff]
    %v51 = vld [vmem:[#allocation2 + $0x8] sm:$0xff]
    %v52 = vld [vmem:[#allocation4] sm:$0xff]
    %v53 = vld [vmem:[#allocation4 + $0x8] sm:$0xff]
    %v54 = vld [vmem:[%s2] sm:$0xff]
    %v55 = vmul.f32 %v50, %v52
    %v56 = vmul.f32 %v51, %v53
    %v57 = vadd.f32 %v55, %v56
    %58 = vadd.xlane.f32.xlu0 %v57
    %v59 = vpop.xlane.xlu0 %58
    %v60 = vadd.f32 %v54, %v59
    %vm61 = vcmask 7168
    %62 = vst.msk [vmem:[%s2] sm:$0xff] %vm61, %v60
    %v63 = vld [vmem:[%s3] sm:$0xff]
    %v64 = vmul.f32 %v50, %v50
    %v65 = vmul.f32 %v51, %v51
    %v66 = vmul.f32 %v52, %v52
    %v67 = vmul.f32 %v53, %v53
    %v68 = vadd.f32 %v64, %v66
    %v69 = vadd.f32 %v65, %v67
    %v70 = vadd.f32 %v68, %v69
    %71 = vadd.xlane.f32.xlu0 %v70
    %v72 = vpop.xlane.xlu0 %71
    %v73 = vadd.f32 %v63, %v72
    %74 = vst.msk [vmem:[%s3] sm:$0xff] %vm61, %v73
    %v75 = vmax.f32 %v50, 0.001
    %v76 = vmax.f32 %v51, 0.001
    %v77 = vmin.f32 %v75, 0.999
    %v78 = vmin.f32 %v76, 0.999
    %v79 = vlog2.pop %v77
    %v80 = vmul.f32 %v79, 0.6931472
    %v81 = vlog2.pop %v78
    %v82 = vmul.f32 %v81, 0.6931472
    %v83 = vsub.f32 0.0, %v77
    %v84 = vsub.f32 0.0, %v78
    %v85 = vadd.f32 %v83, 1.0
    %v86 = vlog2.pop %v85
    %v87 = vmul.f32 %v86, 0.6931472
    %v88 = vmul.f32 -0.5, %v83
    %v89 = vadd.f32 %v88, 1.0
    %v90 = vmul.f32 %v89, %v83
    %v91 = vand.u32 2147483647, %v83
    %vm92 = vcmp.lt.f32.partialorder %v91, 0.0004427343
    %v93 = vsel %vm92, %v90, %v87
    %v94 = vadd.f32 %v84, 1.0
    %v95 = vlog2.pop %v94
    %v96 = vmul.f32 %v95, 0.6931472
    %v97 = vmul.f32 -0.5, %v84
    %v98 = vadd.f32 %v97, 1.0
    %v99 = vmul.f32 %v98, %v84
    %v100 = vand.u32 2147483647, %v84
    %vm101 = vcmp.lt.f32.partialorder %v100, 0.0004427343
    %v102 = vsel %vm101, %v99, %v96
    %v103 = vsub.f32 1.0, %v77
    %v104 = vsub.f32 1.0, %v78
    %v105 = vmul.f32 %v103, %v103
    %v106 = vmul.f32 %v104, %v104
    %v107 = vmul.f32 %v77, %v77
    %v108 = vmul.f32 %v78, %v78
    %v109 = vmul.f32 %v52, %v105
    %v110 = vmul.f32 %v53, %v106
    %v111 = vmul.f32 %v109, %v80
    %v112 = vmul.f32 %v110, %v82
    %v113 = vsub.f32 1.0, %v52
    %v114 = vsub.f32 1.0, %v53
    %v115 = vmul.f32 %v113, %v107
    %v116 = vmul.f32 %v114, %v108
    %v117 = vmul.f32 %v115, %v93
    %v118 = vmul.f32 %v116, %v102
    %v119 = vadd.f32 %v111, %v117
    %v120 = vadd.f32 %v112, %v118
    %v121 = vsub.f32 0.0, %v119
    %v122 = vsub.f32 0.0, %v120
    %v123 = vld [vmem:[%s4] sm:$0xff]
    %v124 = vadd.f32 %v121, %v122
    %125 = vadd.xlane.f32.xlu0 %v124
    %v126 = vpop.xlane.xlu0 %125
    %v127 = vadd.f32 %v123, %v126
    %128 = vst.msk [vmem:[%s4] sm:$0xff] %vm61, %v127
    // Predicated region
    $region22: #{tpu_custom_call.1} parent=1 // pred_check
      _
    $region23: #{tpu_custom_call.1} parent=1 // pred_check_branch
      %130 = sbr.rel (0) target = $region25
    $region24: #{tpu_custom_call.1} parent=1 // pred_region
      _
    $region25: #{tpu_custom_call.1} parent=1 // pred_fallthru
      _
    // Predicated region
    $region26: #{tpu_custom_call.1} parent=1 // pred_check
      _
    $region27: #{tpu_custom_call.1} parent=1 // pred_check_branch
      %132 = sbr.rel (0) target = $region29
    $region28: #{tpu_custom_call.1} parent=1 // pred_region
      _
    $region29: #{tpu_custom_call.1} parent=1 // pred_fallthru
      _
    // Predicated region
    $region30: #{tpu_custom_call.1} parent=1 // pred_check
      _
    $region31: #{tpu_custom_call.1} parent=1 // pred_check_branch
      %134 = sbr.rel (0) target = $region33
    $region32: #{tpu_custom_call.1} parent=1 // pred_region
      _
    $region33: #{tpu_custom_call.1} parent=1 // pred_fallthru
      _
    // Predicated region
    $region34: #{tpu_custom_call.1} parent=1 // pred_check
      _
    $region35: #{tpu_custom_call.1} parent=1 // pred_check_branch
      %136 = sbr.rel (0) target = $region37
    $region36: #{tpu_custom_call.1} parent=1 // pred_region
      _
    $region37: #{tpu_custom_call.1} parent=1 // pred_fallthru
      _
    // Predicated region
    $region38: #{tpu_custom_call.1} parent=1 // pred_check
      _
    $region39: #{tpu_custom_call.1} parent=1 // pred_check_branch
      %138 = sbr.rel (0) target = $region41
    $region40: #{tpu_custom_call.1} parent=1 // pred_region
      _
    $region41: #{tpu_custom_call.1} parent=1 // pred_fallthru
      _
    // Predicated region
    $region42: #{tpu_custom_call.1} parent=1 // pred_check
      _
    $region43: #{tpu_custom_call.1} parent=1 // pred_check_branch
      %140 = sbr.rel (0) target = $region45
    $region44: #{tpu_custom_call.1} parent=1 // pred_region
      _
    $region45: #{tpu_custom_call.1} parent=1 // pred_fallthru
      _
    %141 = vsyncpa [#allocation3], 1
    %142 = vsyncpa [#allocation5], 1

</llo_original>
